<compile_context>
chip_gen: v7x
topology: tpu7x:2x2x1
jax: 0.10.0
libtpu: 0.0.40
codegen_flags: <defaults>
</compile_context>

<pallas_src>
import math

import jax
import jax.numpy as jnp
from jax.experimental import pallas as pl
from jax.experimental.pallas import tpu as pltpu


# ---------------------------------------------------------------------------
# Path 1: metadata-only reshape (preferred).
# ---------------------------------------------------------------------------
def flatten(x: jax.Array) -> jax.Array:
    """Equivalent of torch Flatten: x.view(x.size(0), -1). No HBM traffic."""
    return x.reshape(x.shape[0], -1)


# ---------------------------------------------------------------------------
# Path 2: kernel boundary via direct HBM->HBM DMA (no VMEM staging).
# ---------------------------------------------------------------------------
def _flatten_dma_kernel(x_hbm, o_hbm, sem):
    # One bulk async copy; the identity copy does zero compute, so staging
    # through VMEM buys nothing on any generation.
    cp = pltpu.make_async_copy(x_hbm, o_hbm, sem)
    cp.start()
    cp.wait()


def flatten_pallas(x: jax.Array) -> jax.Array:
    """Flatten behind an explicit Pallas kernel boundary (HBM->HBM DMA)."""
    b = x.shape[0]
    feat = math.prod(x.shape[1:]) if x.ndim > 1 else 1
    x2d = x.reshape(b, feat)  # row-major collapse, metadata-only
    itemsize = jnp.dtype(x.dtype).itemsize
    return pl.pallas_call(
        _flatten_dma_kernel,
        out_shape=jax.ShapeDtypeStruct((b, feat), x.dtype),
        in_specs=[pl.BlockSpec(memory_space=pl.ANY)],
        out_specs=pl.BlockSpec(memory_space=pl.ANY),
        scratch_shapes=[pltpu.SemaphoreType.DMA],
        cost_estimate=pl.CostEstimate(
            flops=0, transcendentals=0, bytes_accessed=2 * b * feat * itemsize
        ),
    )(x2d)


# ---------------------------------------------------------------------------
# Path 3: tiled VMEM copy (pipelined block structure), improved block picker.
# ---------------------------------------------------------------------------
def _flatten_copy_kernel(x_ref, o_ref):
    o_ref[...] = x_ref[...]


def _pick_block(b: int, feat: int, dtype) -> tuple[int, int]:
    """Pick a (block_b, block_f) near ~2 MiB, dtype-sublane aligned."""
    itemsize = jnp.dtype(dtype).itemsize
    target_bytes = 2 * 1024 * 1024  # safe on v5e (16 MiB scoped) and v7x (32 MiB)

    # Minimum sublane granularity: 8 rows for f32, 16 for bf16, 32 for int8/fp8
    # (or the full batch extent when b is smaller).
    sub = min(b, max(8, 32 // itemsize))

    if feat % 128 == 0:
        # Lane-dense block_f (multiple of 128) sized against the minimum-row block.
        max_f = max(128, (target_bytes // max(1, sub * itemsize)) // 128 * 128)
        block_f = min(feat, max_f)
    else:
        # Non-128-aligned feat: must take the full extent to satisfy the
        # (8,128)-or-full-dim constraint; compensate by shrinking block_b below.
        block_f = feat

    # Grow (or shrink) block_b toward the byte budget, in multiples of `sub`
    # (sub is 8/16/32, always a multiple of 8, or the full batch extent).
    rows_budget = max(1, target_bytes // max(1, block_f * itemsize))
    block_b = min(b, max(sub, (rows_budget // sub) * sub))

    # Prefer >=2 grid steps (batch axis is "parallel") so v7x's two
    # TensorCores both get work — only if we can halve without going below
    # the sublane tile.
    if pl.cdiv(b, block_b) * pl.cdiv(feat, block_f) < 2 and block_b >= 2 * sub:
        block_b = max(sub, ((block_b // 2) // sub) * sub)

    return block_b, block_f


def flatten_pallas_tiled(x: jax.Array, *, donate: bool = False) -> jax.Array:
    """Flatten via a tiled Pallas copy.

    Set donate=True only when the caller actually donates x (jit
    donate_argnums); otherwise aliasing forces a defensive copy and slows
    things down.
    """
    b = x.shape[0]
    feat = math.prod(x.shape[1:]) if x.ndim > 1 else 1
    x2d = x.reshape(b, feat)
    itemsize = jnp.dtype(x.dtype).itemsize

    block_b, block_f = _pick_block(b, feat, x.dtype)
    grid = (pl.cdiv(b, block_b), pl.cdiv(feat, block_f))

    return pl.pallas_call(
        _flatten_copy_kernel,
        out_shape=jax.ShapeDtypeStruct((b, feat), x.dtype),
        grid=grid,
        in_specs=[pl.BlockSpec((block_b, block_f), lambda i, j: (i, j))],
        out_specs=pl.BlockSpec((block_b, block_f), lambda i, j: (i, j)),
        input_output_aliases=({0: 0} if donate else {}),
        cost_estimate=pl.CostEstimate(
            flops=0, transcendentals=0, bytes_accessed=2 * b * feat * itemsize
        ),
        compiler_params=pltpu.CompilerParams(
            dimension_semantics=("parallel", "parallel"),
        ),
    )(x2d)


if __name__ == "__main__":
    key = jax.random.PRNGKey(0)
    # Small NCHW input consistent with a conv-style feature map.
    x = jax.random.normal(key, (2, 4, 16, 16), dtype=jnp.float32)

    ref = x.reshape(x.shape[0], -1)

    # Path 1: metadata-only reshape (the preferred implementation).
    y_fast = flatten(x)
    jax.block_until_ready(y_fast)
    assert y_fast.shape == (2, 4 * 16 * 16)
    assert y_fast.dtype == x.dtype
    assert bool(jnp.array_equal(y_fast, ref))

    # Path 2: HBM->HBM DMA kernel boundary.
    y_dma = flatten_pallas(x)
    jax.block_until_ready(y_dma)
    assert y_dma.shape == (2, 4 * 16 * 16)
    assert y_dma.dtype == x.dtype
    assert bool(jnp.array_equal(y_dma, ref))

    # Path 3: tiled VMEM copy (non-aliased by default).
    y_tiled = flatten_pallas_tiled(x)
    jax.block_until_ready(y_tiled)
    assert y_tiled.shape == (2, 4 * 16 * 16)
    assert y_tiled.dtype == x.dtype
    assert bool(jnp.array_equal(y_tiled, ref))

    print("KERNEL_OK")
</pallas_src>

<mosaic_0001>
module attributes {stable_mosaic.version = 11 : i64} {
  func.func @_flatten_dma_kernel(%arg0: memref<2x1024xf32, #tpu.memory_space<any>>, %arg1: memref<2x1024xf32, #tpu.memory_space<any>>, %arg2: memref<!tpu.dma_semaphore, #tpu.memory_space<semaphore_mem>>) attributes {dimension_semantics = [], scalar_prefetch = 0 : i64, scratch_operands = 1 : i64, tpu.core_type = #tpu.core_type<tc>} {
    tpu.enqueue_dma source(%arg0 : memref<2x1024xf32, #tpu.memory_space<any>>) target(%arg1 : memref<2x1024xf32, #tpu.memory_space<any>>) target_semaphore(%arg2 : memref<!tpu.dma_semaphore, #tpu.memory_space<semaphore_mem>>)
    tpu.wait_dma2 semaphore(%arg2 : memref<!tpu.dma_semaphore, #tpu.memory_space<semaphore_mem>>) src(%arg0 : memref<2x1024xf32, #tpu.memory_space<any>>) dst(%arg1 : memref<2x1024xf32, #tpu.memory_space<any>>)
    return
  }
}

</mosaic_0001>

<llo_original>
// kernel: tpu_custom_call.1
$region0: #{tpu_custom_call.1}
  #allocation0 [shape = 'u32[]', space=smem, size = 0x4, offset = 0x4, fixed_abs, tag = 'smem constant byte address 0x4 - core index']
  #allocation1 [shape = 'u32[144,128]{1,0:T(1,128)}', space=vmem, size = 0x12000, scoped, tag = 'internal scratch']
  #allocation2 [shape = 's32[1]{0}', space=sflag, size = 0x4, scoped, tag = 'scratch operand']
  #allocation3 [shape = 's32[]', space=sflag, size = 0x4, offset = 0, fixed_abs, tag = 'sflag constant byte address 0x0 - dummy sync flag']
  #allocation4 [shape = 'u32[0]{0}', space=smem, size = 0, offset = 0, fixed_abs, tag = 'smem constant byte address 0x0 - null']
  %s0 = inlined_call_operand.hbm [shape: f32[2,1024], index: 0, kind: input, shape index: {}]
  %s1 = inlined_call_operand.hbm [shape: f32[2,1024], index: 1, kind: output, shape index: {}]
  %s2 = sld [smem:[#allocation0]]
  $region2: #{tpu_custom_call.1} parent=0
    _
  %s4 = ssub.s32 1, %s2
  %s5 = scalar_select 0, %s4, %s2
  %s7 = sshll.u32 1, 14
  %s8 = sxor.u32 4294967295, %s7
  %s11 = sshll.u32 3, 24
  %s12 = sxor.u32 4294967295, %s11
  %s13 = sand.u32 0, %s12
  %s15 = sor.u32 %s13, 0
  %18 = dma.general %s0, 256, %s1, [#allocation2], [#allocation3], [#allocation4], %s15, 0
  %s19 = smul.u32 2, 1
  %s20 = smul.u32 %s19, 8
  %s21 = sshll.u32 %s20, 4
  %22 = dma.done [#allocation2], %s21
  %23 = vsyncmov [#allocation2]
  %s24 = vpop.sfrf %23
  %p25 = scmp.eq.s32.totalorder %s24, 0
  %p26 = pneg %p25
  %28 = shalt.err (%p26)

</llo_original>
